<compile_context>
chip_gen: v7x
topology: tpu7x:2x2x1
jax: 0.10.0
libtpu: 0.0.40
codegen_flags: <defaults>
</compile_context>

<pallas_src>
import functools

import jax
import jax.numpy as jnp
from jax.experimental import pallas as pl
from jax.experimental.pallas import tpu as pltpu


def _round_up(n, m):
    return (n + m - 1) // m * m


def _mlp_kernel(x_ref, w1_ref, b1_ref, w2_ref, b2_ref, o_ref):
    # x_ref: (TM, Dp) tile of rows; weights (Dp, Dp) and biases (1, Dp) are
    # resident across the whole grid.
    x = x_ref[...].astype(w1_ref.dtype)                       # bf16 MXU path
    h = jnp.dot(x, w1_ref[...], preferred_element_type=jnp.float32)
    h = jnp.maximum(h + b1_ref[...], 0.0)                     # bias + ReLU in f32
    # NOTE: if tile_m is pushed to 512+ with large Dp and the bundle dump shows
    # spills, chunk this second matmul's K dimension instead of letting the
    # compiler spill h.
    y = jnp.dot(h.astype(w2_ref.dtype), w2_ref[...],
                preferred_element_type=jnp.float32)
    o_ref[...] = (y + b2_ref[...]).astype(o_ref.dtype)


@functools.partial(
    jax.jit,
    static_argnames=("tile_m", "single_buffer_weights", "vmem_limit_bytes"))
def mlp_forward(x, w1_t, b1, w2_t, b2, *, tile_m=256,
                single_buffer_weights=True,
                vmem_limit_bytes=64 * 1024 * 1024):
    """x: (N, D). w1_t/w2_t: (Dp, Dp) pre-transposed (in, out), lane-padded.
    b1/b2: (1, Dp) float32. Returns (N, D)."""
    N, D = x.shape
    Dp = w1_t.shape[0]
    if D != Dp:
        # Lane-pad the activations (zero columns match the zero-padded weight
        # rows). In production D is already a multiple of 128 and this is a
        # no-op; rows are never padded (handled by Pallas block masking).
        x = jnp.pad(x, ((0, 0), (0, Dp - D)))

    # Clamp the row tile so a tiny batch does not allocate a huge, mostly
    # masked block; keep it a multiple of 8 (sublane constraint).
    tm = min(_round_up(tile_m, 8), _round_up(N, 8))
    grid = (pl.cdiv(N, tm),)

    # Weights/biases have a constant index_map: single-buffer them so their
    # VMEM footprint is not doubled by the pipeline.
    const_kwargs = (
        dict(pipeline_mode=pl.Buffered(1)) if single_buffer_weights else {})

    def const_spec(shape):
        return pl.BlockSpec(shape, lambda i: (0,) * len(shape), **const_kwargs)

    flops = 4 * N * Dp * Dp  # two (N,Dp)x(Dp,Dp) matmuls
    bytes_accessed = (
        x.size * x.dtype.itemsize
        + w1_t.size * w1_t.dtype.itemsize
        + w2_t.size * w2_t.dtype.itemsize
        + b1.size * b1.dtype.itemsize
        + b2.size * b2.dtype.itemsize
        + N * Dp * x.dtype.itemsize)  # output

    out = pl.pallas_call(
        _mlp_kernel,
        out_shape=jax.ShapeDtypeStruct((N, Dp), x.dtype),
        grid_spec=pltpu.PrefetchScalarGridSpec(
            num_scalar_prefetch=0,
            grid=grid,
            in_specs=[
                pl.BlockSpec((tm, Dp), lambda i: (i, 0)),   # x row tile
                const_spec((Dp, Dp)),                       # W1^T (resident)
                const_spec((1, Dp)),                        # b1
                const_spec((Dp, Dp)),                       # W2^T (resident)
                const_spec((1, Dp)),                        # b2
            ],
            out_specs=pl.BlockSpec((tm, Dp), lambda i: (i, 0)),
        ),
        compiler_params=pltpu.CompilerParams(
            dimension_semantics=("parallel",),
            vmem_limit_bytes=vmem_limit_bytes),
        cost_estimate=pl.CostEstimate(
            flops=flops, transcendentals=0, bytes_accessed=bytes_accessed),
    )(x, w1_t, b1, w2_t, b2)

    return out[:, :D] if D != Dp else out


def init_params(key, hidden_dim, weight_dtype=jnp.bfloat16, lane=128):
    """Matches the PyTorch module's init: xavier_uniform_ weights, default
    Linear bias init U(-1/sqrt(fan_in), +). Weights are transposed to
    (in, out), zero-padded to a multiple of `lane`, and cast to `weight_dtype`
    exactly once; biases stay float32 for the f32 bias-add/ReLU path."""
    k1, k2, k3, k4 = jax.random.split(key, 4)
    xavier = (6.0 / (hidden_dim + hidden_dim)) ** 0.5
    bbound = 1.0 / (hidden_dim ** 0.5)
    # PyTorch Linear weight is (out, in).
    w1 = jax.random.uniform(k1, (hidden_dim, hidden_dim), jnp.float32,
                            -xavier, xavier)
    w2 = jax.random.uniform(k2, (hidden_dim, hidden_dim), jnp.float32,
                            -xavier, xavier)
    b1 = jax.random.uniform(k3, (hidden_dim,), jnp.float32, -bbound, bbound)
    b2 = jax.random.uniform(k4, (hidden_dim,), jnp.float32, -bbound, bbound)

    Dp = _round_up(hidden_dim, lane)
    pad = Dp - hidden_dim
    w1_t = jnp.pad(w1.T, ((0, pad), (0, pad))).astype(weight_dtype)
    w2_t = jnp.pad(w2.T, ((0, pad), (0, pad))).astype(weight_dtype)
    b1p = jnp.pad(b1, (0, pad)).reshape(1, Dp)
    b2p = jnp.pad(b2, (0, pad)).reshape(1, Dp)
    return w1_t, b1p, w2_t, b2p


if __name__ == "__main__":
    hidden_dim = 32
    batch = 8

    key = jax.random.PRNGKey(0)
    kx, kp = jax.random.split(key)
    x = jax.random.normal(kx, (batch, hidden_dim), jnp.float32)
    w1_t, b1, w2_t, b2 = init_params(kp, hidden_dim, weight_dtype=jnp.bfloat16)

    try:
        y = mlp_forward(x, w1_t, b1, w2_t, b2)
        jax.block_until_ready(y)
    except Exception:
        # Fallback if this JAX build rejects single-buffered (Buffered(1))
        # specs on pallas_call's implicit pipeline.
        y = mlp_forward(x, w1_t, b1, w2_t, b2, single_buffer_weights=False)
        jax.block_until_ready(y)

    # Pure-JAX reference with the identical dtype path (bf16 matmuls, f32
    # accumulation, f32 bias-add/ReLU).
    Dp = w1_t.shape[0]
    xp = jnp.pad(x, ((0, 0), (0, Dp - hidden_dim))).astype(jnp.bfloat16)
    h = jnp.maximum(
        jnp.dot(xp, w1_t, preferred_element_type=jnp.float32) + b1, 0.0)
    ref = (jnp.dot(h.astype(jnp.bfloat16), w2_t,
                   preferred_element_type=jnp.float32) + b2)
    ref = ref.astype(x.dtype)[:, :hidden_dim]

    assert y.shape == (batch, hidden_dim)
    assert jnp.allclose(y, ref, atol=1e-2, rtol=1e-2)

    print("KERNEL_OK")
</pallas_src>

<mosaic_0001>
module attributes {stable_mosaic.version = 11 : i64} {
  func.func @_mlp_kernel(%arg0: i32, %arg1: memref<8x128xf32, #tpu.memory_space<vmem>>, %arg2: memref<128x128xbf16, #tpu.memory_space<vmem>>, %arg3: memref<1x128xf32, #tpu.memory_space<vmem>>, %arg4: memref<128x128xbf16, #tpu.memory_space<vmem>>, %arg5: memref<1x128xf32, #tpu.memory_space<vmem>>, %arg6: memref<8x128xf32, #tpu.memory_space<vmem>>) attributes {dimension_semantics = [#tpu.dimension_semantics<parallel>], iteration_bounds = array<i64: 1>, scalar_prefetch = 0 : i64, scratch_operands = 0 : i64, tpu.core_type = #tpu.core_type<tc>, window_params = [{transform_indices = @transform_0, window_bounds = array<i64: 8, 128>}, {pipeline_mode = #tpu.pipeline_mode<synchronous>, transform_indices = @transform_1, window_bounds = array<i64: 128, 128>}, {pipeline_mode = #tpu.pipeline_mode<synchronous>, transform_indices = @transform_2, window_bounds = array<i64: 1, 128>}, {pipeline_mode = #tpu.pipeline_mode<synchronous>, transform_indices = @transform_3, window_bounds = array<i64: 128, 128>}, {pipeline_mode = #tpu.pipeline_mode<synchronous>, transform_indices = @transform_4, window_bounds = array<i64: 1, 128>}, {transform_indices = @transform_5, window_bounds = array<i64: 8, 128>}]} {
    %c0 = arith.constant 0 : index
    %c0_0 = arith.constant 0 : index
    %0 = vector.load %arg1[%c0, %c0_0] : memref<8x128xf32, #tpu.memory_space<vmem>>, vector<8x128xf32>
    %1 = arith.truncf %0 : vector<8x128xf32> to vector<8x128xbf16>
    %c0_1 = arith.constant 0 : index
    %c0_2 = arith.constant 0 : index
    %2 = vector.load %arg2[%c0_1, %c0_2] : memref<128x128xbf16, #tpu.memory_space<vmem>>, vector<128x128xbf16>
    %cst = arith.constant dense<0.000000e+00> : vector<8x128xf32>
    %3 = tpu.matmul %1, %2, %cst {dimension_numbers = #tpu.dot_dimension_numbers<[1], [0], [0], [1], [0, 0, 1, 1], [], []>} : vector<8x128xbf16>, vector<128x128xbf16>, vector<8x128xf32> -> vector<8x128xf32>
    %c0_3 = arith.constant 0 : index
    %c0_4 = arith.constant 0 : index
    %4 = vector.load %arg3[%c0_3, %c0_4] : memref<1x128xf32, #tpu.memory_space<vmem>>, vector<1x128xf32>
    %5 = vector.broadcast %4 : vector<1x128xf32> to vector<8x128xf32>
    %6 = arith.addf %3, %5 : vector<8x128xf32>
    %cst_5 = arith.constant 0.000000e+00 : f32
    %7 = vector.broadcast %cst_5 : f32 to vector<8x128xf32>
    %8 = arith.maximumf %6, %7 : vector<8x128xf32>
    %9 = arith.truncf %8 : vector<8x128xf32> to vector<8x128xbf16>
    %c0_6 = arith.constant 0 : index
    %c0_7 = arith.constant 0 : index
    %10 = vector.load %arg4[%c0_6, %c0_7] : memref<128x128xbf16, #tpu.memory_space<vmem>>, vector<128x128xbf16>
    %cst_8 = arith.constant dense<0.000000e+00> : vector<8x128xf32>
    %11 = tpu.matmul %9, %10, %cst_8 {dimension_numbers = #tpu.dot_dimension_numbers<[1], [0], [0], [1], [0, 0, 1, 1], [], []>} : vector<8x128xbf16>, vector<128x128xbf16>, vector<8x128xf32> -> vector<8x128xf32>
    %c0_9 = arith.constant 0 : index
    %c0_10 = arith.constant 0 : index
    %12 = vector.load %arg5[%c0_9, %c0_10] : memref<1x128xf32, #tpu.memory_space<vmem>>, vector<1x128xf32>
    %13 = vector.broadcast %12 : vector<1x128xf32> to vector<8x128xf32>
    %14 = arith.addf %11, %13 : vector<8x128xf32>
    %c0_11 = arith.constant 0 : index
    %c0_12 = arith.constant 0 : index
    %15 = vector.load %arg6[%c0_11, %c0_12] : memref<8x128xf32, #tpu.memory_space<vmem>>, vector<8x128xf32>
    tpu.vector_store %arg6[%c0_11, %c0_12], %14 {strides = array<i32>} : memref<8x128xf32, #tpu.memory_space<vmem>>, vector<8x128xf32>,
    return
  }
  func.func @transform_0(%arg0: i32) -> (i32, i32) {
    %c0_i32 = arith.constant 0 : i32
    %c0_i32_0 = arith.constant 0 : i32
    return %arg0, %c0_i32 : i32, i32
  }
  func.func @transform_1(%arg0: i32) -> (i32, i32) {
    %c0_i32 = arith.constant 0 : i32
    %c0_i32_0 = arith.constant 0 : i32
    %c0_i32_1 = arith.constant 0 : i32
    return %c0_i32, %c0_i32_0 : i32, i32
  }
  func.func @transform_2(%arg0: i32) -> (i32, i32) {
    %c0_i32 = arith.constant 0 : i32
    %c0_i32_0 = arith.constant 0 : i32
    %c0_i32_1 = arith.constant 0 : i32
    return %c0_i32, %c0_i32_0 : i32, i32
  }
  func.func @transform_3(%arg0: i32) -> (i32, i32) {
    %c0_i32 = arith.constant 0 : i32
    %c0_i32_0 = arith.constant 0 : i32
    %c0_i32_1 = arith.constant 0 : i32
    return %c0_i32, %c0_i32_0 : i32, i32
  }
  func.func @transform_4(%arg0: i32) -> (i32, i32) {
    %c0_i32 = arith.constant 0 : i32
    %c0_i32_0 = arith.constant 0 : i32
    %c0_i32_1 = arith.constant 0 : i32
    return %c0_i32, %c0_i32_0 : i32, i32
  }
  func.func @transform_5(%arg0: i32) -> (i32, i32) {
    %c0_i32 = arith.constant 0 : i32
    %c0_i32_0 = arith.constant 0 : i32
    return %arg0, %c0_i32 : i32, i32
  }
}

module attributes {stable_mosaic.version = 11 : i64} {
  func.func @_mlp_kernel(%arg0: i32, %arg1: memref<8x128xf32, #tpu.memory_space<vmem>>, %arg2: memref<128x128xbf16, #tpu.memory_space<vmem>>, %arg3: memref<1x128xf32, #tpu.memory_space<vmem>>, %arg4: memref<128x128xbf16, #tpu.memory_space<vmem>>, %arg5: memref<1x128xf32, #tpu.memory_space<vmem>>, %arg6: memref<8x128xf32, #tpu.memory_space<vmem>>) attributes {dimension_semantics = [#tpu.dimension_semantics<parallel>], iteration_bounds = array<i64: 1>, scalar_prefetch = 0 : i64, scratch_operands = 0 : i64, tpu.core_type = #tpu.core_type<tc>, window_params = [{transform_indices = @transform_0, window_bounds = array<i64: 8, 128>}, {pipeline_mode = #tpu.pipeline_mode<synchronous>, transform_indices = @transform_1, window_bounds = array<i64: 128, 128>}, {pipeline_mode = #tpu.pipeline_mode<synchronous>, transform_indices = @transform_2, window_bounds = array<i64: 1, 128>}, {pipeline_mode = #tpu.pipeline_mode<synchronous>, transform_indices = @transform_3, window_bounds = array<i64: 128, 128>}, {pipeline_mode = #tpu.pipeline_mode<synchronous>, transform_indices = @transform_4, window_bounds = array<i64: 1, 128>}, {transform_indices = @transform_5, window_bounds = array<i64: 8, 128>}]} {
    %c0 = arith.constant 0 : index
    %c0_0 = arith.constant 0 : index
    %0 = vector.load %arg1[%c0, %c0_0] : memref<8x128xf32, #tpu.memory_space<vmem>>, vector<8x128xf32>
    %1 = arith.truncf %0 : vector<8x128xf32> to vector<8x128xbf16>
    %c0_1 = arith.constant 0 : index
    %c0_2 = arith.constant 0 : index
    %2 = vector.load %arg2[%c0_1, %c0_2] : memref<128x128xbf16, #tpu.memory_space<vmem>>, vector<128x128xbf16>
    %cst = arith.constant dense<0.000000e+00> : vector<8x128xf32>
    %3 = tpu.matmul %1, %2, %cst {dimension_numbers = #tpu.dot_dimension_numbers<[1], [0], [0], [1], [0, 0, 1, 1], [], []>} : vector<8x128xbf16>, vector<128x128xbf16>, vector<8x128xf32> -> vector<8x128xf32>
    %c0_3 = arith.constant 0 : index
    %c0_4 = arith.constant 0 : index
    %4 = vector.load %arg3[%c0_3, %c0_4] : memref<1x128xf32, #tpu.memory_space<vmem>>, vector<1x128xf32>
    %5 = vector.broadcast %4 : vector<1x128xf32> to vector<8x128xf32>
    %6 = arith.addf %3, %5 : vector<8x128xf32>
    %cst_5 = arith.constant 0.000000e+00 : f32
    %7 = vector.broadcast %cst_5 : f32 to vector<8x128xf32>
    %8 = arith.maximumf %6, %7 : vector<8x128xf32>
    %9 = arith.truncf %8 : vector<8x128xf32> to vector<8x128xbf16>
    %c0_6 = arith.constant 0 : index
    %c0_7 = arith.constant 0 : index
    %10 = vector.load %arg4[%c0_6, %c0_7] : memref<128x128xbf16, #tpu.memory_space<vmem>>, vector<128x128xbf16>
    %cst_8 = arith.constant dense<0.000000e+00> : vector<8x128xf32>
    %11 = tpu.matmul %9, %10, %cst_8 {dimension_numbers = #tpu.dot_dimension_numbers<[1], [0], [0], [1], [0, 0, 1, 1], [], []>} : vector<8x128xbf16>, vector<128x128xbf16>, vector<8x128xf32> -> vector<8x128xf32>
    %c0_9 = arith.constant 0 : index
    %c0_10 = arith.constant 0 : index
    %12 = vector.load %arg5[%c0_9, %c0_10] : memref<1x128xf32, #tpu.memory_space<vmem>>, vector<1x128xf32>
    %13 = vector.broadcast %12 : vector<1x128xf32> to vector<8x128xf32>
    %14 = arith.addf %11, %13 : vector<8x128xf32>
    %c0_11 = arith.constant 0 : index
    %c0_12 = arith.constant 0 : index
    %15 = vector.load %arg6[%c0_11, %c0_12] : memref<8x128xf32, #tpu.memory_space<vmem>>, vector<8x128xf32>
    tpu.vector_store %arg6[%c0_11, %c0_12], %14 {strides = array<i32>} : memref<8x128xf32, #tpu.memory_space<vmem>>, vector<8x128xf32>,
    return
  }
  func.func @transform_0(%arg0: i32) -> (i32, i32) {
    %c0_i32 = arith.constant 0 : i32
    %c0_i32_0 = arith.constant 0 : i32
    return %arg0, %c0_i32 : i32, i32
  }
  func.func @transform_1(%arg0: i32) -> (i32, i32) {
    %c0_i32 = arith.constant 0 : i32
    %c0_i32_0 = arith.constant 0 : i32
    %c0_i32_1 = arith.constant 0 : i32
    return %c0_i32, %c0_i32_0 : i32, i32
  }
  func.func @transform_2(%arg0: i32) -> (i32, i32) {
    %c0_i32 = arith.constant 0 : i32
    %c0_i32_0 = arith.constant 0 : i32
    %c0_i32_1 = arith.constant 0 : i32
    return %c0_i32, %c0_i32_0 : i32, i32
  }
  func.func @transform_3(%arg0: i32) -> (i32, i32) {
    %c0_i32 = arith.constant 0 : i32
    %c0_i32_0 = arith.constant 0 : i32
    %c0_i32_1 = arith.constant 0 : i32
    return %c0_i32, %c0_i32_0 : i32, i32
  }
  func.func @transform_4(%arg0: i32) -> (i32, i32) {
    %c0_i32 = arith.constant 0 : i32
    %c0_i32_0 = arith.constant 0 : i32
    %c0_i32_1 = arith.constant 0 : i32
    return %c0_i32, %c0_i32_0 : i32, i32
  }
  func.func @transform_5(%arg0: i32) -> (i32, i32) {
    %c0_i32 = arith.constant 0 : i32
    %c0_i32_0 = arith.constant 0 : i32
    return %arg0, %c0_i32 : i32, i32
  }
}

</mosaic_0001>

<llo_original>
// kernel: mlp_forward.1
$region0: #{mlp_forward.1}
  #allocation0 [shape = 'u32[]', space=smem, size = 0x4, offset = 0x4, fixed_abs, tag = 'smem constant byte address 0x4 - core index']
  #allocation1 [shape = 'u32[144,128]{1,0:T(1,128)}', space=vmem, size = 0x12000, scoped, tag = 'internal scratch']
  %s0 = inlined_call_operand.hbm [shape: f32[8,128], index: 0, kind: input, shape index: {}]
  %s1 = inlined_call_operand.hbm [shape: bf16[128,128], index: 1, kind: input, shape index: {}]
  %s2 = inlined_call_operand.hbm [shape: f32[1,128], index: 2, kind: input, shape index: {}]
  %s3 = inlined_call_operand.hbm [shape: bf16[128,128], index: 3, kind: input, shape index: {}]
  %s4 = inlined_call_operand.hbm [shape: f32[1,128], index: 4, kind: input, shape index: {}]
  %s5 = inlined_call_operand.hbm [shape: f32[8,128], index: 5, kind: output, shape index: {}]
  %s6 = sld [smem:[#allocation0]]
  $region50: #{mlp_forward.1} parent=0
    _
  %s8 = ssub.s32 1, %s6
  %s9 = scalar_select 0, %s8, %s6
  $region1: #{mlp_forward.1} parent=0
    #allocation2 [shape = 'u8[4096]{0}', space=vmem, size = 0x1000, scoped, tag = 'input window, operand 0, single buffered']
    #allocation3 [shape = 's32[1]{0}', space=sflag, size = 0x4, scoped, tag = 'scoped memory for mlp_forward.1']
    #allocation4 [shape = 's32[1]{0}', space=sflag, size = 0x4, scoped, tag = 'scoped memory for mlp_forward.1']
    #allocation5 [shape = 'u8[32768]{0}', space=vmem, size = 0x8000, scoped, tag = 'input window, operand 1, single buffered']
    #allocation6 [shape = 's32[1]{0}', space=sflag, size = 0x4, scoped, tag = 'scoped memory for mlp_forward.1']
    #allocation7 [shape = 'u8[512]{0}', space=vmem, size = 0x400, scoped, tag = 'input window, operand 2, single buffered']
    #allocation8 [shape = 'u8[32768]{0}', space=vmem, size = 0x8000, scoped, tag = 'input window, operand 3, single buffered']
    #allocation9 [shape = 's32[1]{0}', space=sflag, size = 0x4, scoped, tag = 'scoped memory for mlp_forward.1']
    #allocation10 [shape = 'u8[512]{0}', space=vmem, size = 0x400, scoped, tag = 'input window, operand 4, single buffered']
    #allocation11 [shape = 'u8[4096]{0}', space=vmem, size = 0x1000, scoped, tag = 'output window, operand 0, single buffered']
    %10 = vsyncpa [#allocation3], 0
    %11 = vsyncpa [#allocation6], 0
    %12 = vsyncpa [#allocation9], 0
    %13 = vsyncpa [#allocation4], 0
    // Predicated region
    $region2: #{mlp_forward.1} parent=1 // pred_check
      _
    $region3: #{mlp_forward.1} parent=1 // pred_check_branch
      %15 = sbr.rel (0) target = $region5
    $region4: #{mlp_forward.1} parent=1 // pred_region
      %s17 = ssub.s32 128, 128
      %18 = vsyncadd [#allocation3], %s17
      %s20 = sshll.u32 [#allocation2], 4
      %s21 = int_to_ptr.vmem [resolvable:$true] %s20
      %23 = dma.hbm_to_vmem [thread:$0]  %s0, 128, %s21, [#allocation3]
    $region5: #{mlp_forward.1} parent=1 // pred_fallthru
      _
    // Predicated region
    $region6: #{mlp_forward.1} parent=1 // pred_check
      _
    $region7: #{mlp_forward.1} parent=1 // pred_check_branch
      %25 = sbr.rel (0) target = $region9
    $region8: #{mlp_forward.1} parent=1 // pred_region
      %s27 = ssub.s32 1024, 1024
      %28 = vsyncadd [#allocation6], %s27
      %s29 = sshll.u32 [#allocation5], 4
      %s30 = int_to_ptr.vmem [resolvable:$true] %s29
      %35 = dma.hbm_to_vmem [thread:$0]  %s1, 1024, %s30, [#allocation6], 64, 64, 4
    $region9: #{mlp_forward.1} parent=1 // pred_fallthru
      _
    // Predicated region
    $region10: #{mlp_forward.1} parent=1 // pred_check
      _
    $region11: #{mlp_forward.1} parent=1 // pred_check_branch
      %37 = sbr.rel (0) target = $region13
    $region12: #{mlp_forward.1} parent=1 // pred_region
      %s39 = ssub.s32 16, 16
      %40 = vsyncadd [#allocation6], %s39
      %s42 = sshll.u32 [#allocation7], 4
      %s43 = int_to_ptr.vmem [resolvable:$true] %s42
      %45 = dma.hbm_to_vmem [thread:$0]  %s2, 16, %s43, [#allocation6]
    $region13: #{mlp_forward.1} parent=1 // pred_fallthru
      _
    // Predicated region
    $region14: #{mlp_forward.1} parent=1 // pred_check
      _
    $region15: #{mlp_forward.1} parent=1 // pred_check_branch
      %47 = sbr.rel (0) target = $region17
    $region16: #{mlp_forward.1} parent=1 // pred_region
      %s49 = ssub.s32 1024, 1024
      %50 = vsyncadd [#allocation9], %s49
      %s51 = sshll.u32 [#allocation8], 4
      %s52 = int_to_ptr.vmem [resolvable:$true] %s51
      %57 = dma.hbm_to_vmem [thread:$0]  %s3, 1024, %s52, [#allocation9], 64, 64, 4
    $region17: #{mlp_forward.1} parent=1 // pred_fallthru
      _
    // Predicated region
    $region18: #{mlp_forward.1} parent=1 // pred_check
      _
    $region19: #{mlp_forward.1} parent=1 // pred_check_branch
      %59 = sbr.rel (0) target = $region21
    $region20: #{mlp_forward.1} parent=1 // pred_region
      %s61 = ssub.s32 16, 16
      %62 = vsyncadd [#allocation9], %s61
      %s64 = sshll.u32 [#allocation10], 4
      %s65 = int_to_ptr.vmem [resolvable:$true] %s64
      %67 = dma.hbm_to_vmem [thread:$0]  %s4, 16, %s65, [#allocation9]
    $region21: #{mlp_forward.1} parent=1 // pred_fallthru
      _
    // Predicated region
    $region22: #{mlp_forward.1} parent=1 // pred_check
      _
    $region23: #{mlp_forward.1} parent=1 // pred_check_branch
      %69 = sbr.rel (0) target = $region25
    $region24: #{mlp_forward.1} parent=1 // pred_region
      %70 = dma.done [#allocation3], 128
    $region25: #{mlp_forward.1} parent=1 // pred_fallthru
      _
    // Predicated region
    $region26: #{mlp_forward.1} parent=1 // pred_check
      _
    $region27: #{mlp_forward.1} parent=1 // pred_check_branch
      %72 = sbr.rel (0) target = $region29
    $region28: #{mlp_forward.1} parent=1 // pred_region
      %73 = dma.done [#allocation6], 1024
    $region29: #{mlp_forward.1} parent=1 // pred_fallthru
      _
    // Predicated region
    $region30: #{mlp_forward.1} parent=1 // pred_check
      _
    $region31: #{mlp_forward.1} parent=1 // pred_check_branch
      %75 = sbr.rel (0) target = $region33
    $region32: #{mlp_forward.1} parent=1 // pred_region
      %76 = dma.done [#allocation6], 16
    $region33: #{mlp_forward.1} parent=1 // pred_fallthru
      _
    // Predicated region
    $region34: #{mlp_forward.1} parent=1 // pred_check
      _
    $region35: #{mlp_forward.1} parent=1 // pred_check_branch
      %78 = sbr.rel (0) target = $region37
    $region36: #{mlp_forward.1} parent=1 // pred_region
      %79 = dma.done [#allocation9], 1024
    $region37: #{mlp_forward.1} parent=1 // pred_fallthru
      _
    // Predicated region
    $region38: #{mlp_forward.1} parent=1 // pred_check
      _
    $region39: #{mlp_forward.1} parent=1 // pred_check_branch
      %81 = sbr.rel (0) target = $region41
    $region40: #{mlp_forward.1} parent=1 // pred_region
      %82 = dma.done [#allocation9], 16
    $region41: #{mlp_forward.1} parent=1 // pred_fallthru
      _
    %v84 = vld [vmem:[#allocation2] sm:$0xff]
    %v85 = vpack.c.bf16 %v84, %v84
    %v86 = vld [vmem:[#allocation5] sm:$0xf]
    %v87 = vld [vmem:[#allocation5 + $0x4] sm:$0xf]
    %v88 = vld [vmem:[#allocation5 + $0x8] sm:$0xf]
    %v89 = vld [vmem:[#allocation5 + $0xc] sm:$0xf]
    %v90 = vld [vmem:[#allocation5 + $0x10] sm:$0xf]
    %v91 = vld [vmem:[#allocation5 + $0x14] sm:$0xf]
    %v92 = vld [vmem:[#allocation5 + $0x18] sm:$0xf]
    %v93 = vld [vmem:[#allocation5 + $0x1c] sm:$0xf]
    %v94 = vld [vmem:[#allocation5 + $0x20] sm:$0xf]
    %v95 = vld [vmem:[#allocation5 + $0x24] sm:$0xf]
    %v96 = vld [vmem:[#allocation5 + $0x28] sm:$0xf]
    %v97 = vld [vmem:[#allocation5 + $0x2c] sm:$0xf]
    %v98 = vld [vmem:[#allocation5 + $0x30] sm:$0xf]
    %v99 = vld [vmem:[#allocation5 + $0x34] sm:$0xf]
    %v100 = vld [vmem:[#allocation5 + $0x38] sm:$0xf]
    %v101 = vld [vmem:[#allocation5 + $0x3c] sm:$0xf]
    %v102 = vld [vmem:[#allocation7] sm:$0x1]
    %v104 = vlaneseq
    %v105 = vshrl.u32 %v104, 7
    %v106 = vsub.s32 0, %v105
    %v107 = vrot.slane %v102, %v106
    %v125 = vunpack.c.l.b16 %v86
    %v126 = vunpack.c.l.b16 %v87
    %v127 = vunpack.c.l.b16 %v88
    %v128 = vunpack.c.l.b16 %v89
    %v129 = vunpack.c.l.b16 %v90
    %v130 = vunpack.c.l.b16 %v91
    %v131 = vunpack.c.l.b16 %v92
    %v132 = vunpack.c.l.b16 %v93
    %v133 = vunpack.c.l.b16 %v94
    %v134 = vunpack.c.l.b16 %v95
    %v135 = vunpack.c.l.b16 %v96
    %v136 = vunpack.c.l.b16 %v97
    %v137 = vunpack.c.l.b16 %v98
    %v138 = vunpack.c.l.b16 %v99
    %v139 = vunpack.c.l.b16 %v100
    %v140 = vunpack.c.l.b16 %v101
    %v141 = vpack.c.b16 %v126, %v125
    %v142 = vpack.c.b16 %v128, %v127
    %v143 = vpack.c.b16 %v130, %v129
    %v144 = vpack.c.b16 %v132, %v131
    %v145 = vpack.c.b16 %v134, %v133
    %v146 = vpack.c.b16 %v136, %v135
    %v147 = vpack.c.b16 %v138, %v137
    %v148 = vpack.c.b16 %v140, %v139
    %157 = vmatprep.subr.bf16.mxu0 0
    %158 = vmatpush1.bf16.msra.mxu0 %v141
    %159 = vmatprep.subr.bf16.mxu0 0
    %160 = vmatpush1.bf16.msra.mxu0 %v142
    %161 = vmatprep.subr.bf16.mxu0 0
    %162 = vmatpush1.bf16.msra.mxu0 %v143
    %163 = vmatprep.subr.bf16.mxu0 0
    %164 = vmatpush1.bf16.msra.mxu0 %v144
    %165 = vmatprep.subr.bf16.mxu0 0
    %166 = vmatpush1.bf16.msra.mxu0 %v145
    %167 = vmatprep.subr.bf16.mxu0 0
    %168 = vmatpush1.bf16.msra.mxu0 %v146
    %169 = vmatprep.subr.bf16.mxu0 0
    %170 = vmatpush1.bf16.msra.mxu0 %v147
    %171 = vmatprep.subr.bf16.mxu0 0
    %172 = vmatpush1.bf16.msra.mxu0 %v148
    %173 = vmatprep.subr.bf16.mxu0 0
    %174 = vmatpush1.bf16.msra.mxu0 0
    %175 = vmatprep.subr.bf16.mxu0 0
    %176 = vmatpush1.bf16.msra.mxu0 0
    %177 = vmatprep.subr.bf16.mxu0 0
    %178 = vmatpush1.bf16.msra.mxu0 0
    %179 = vmatprep.subr.bf16.mxu0 0
    %180 = vmatpush1.bf16.msra.mxu0 0
    %181 = vmatprep.subr.bf16.mxu0 0
    %182 = vmatpush1.bf16.msra.mxu0 0
    %183 = vmatprep.subr.bf16.mxu0 0
    %184 = vmatpush1.bf16.msra.mxu0 0
    %185 = vmatprep.subr.bf16.mxu0 0
    %186 = vmatpush1.bf16.msra.mxu0 0
    %187 = vmatprep.subr.bf16.mxu0 0
    %188 = vmatpush1.bf16.msra.mxu0 0
    %189 = vmatprep.mubr.bf16.mxu0 0
    %190 = vmatmul.mubr.bf16.gmra.mrb[0].mxu0 %v85
    %v191 = vpop.f32.mrb[0].mxu0
    %v192 = vadd.f32 %v107, %v191
    %v193 = vpop.f32.mrb[0].mxu0
    %v194 = vpop.f32.mrb[0].mxu0
    %v195 = vpop.f32.mrb[0].mxu0
    %196 = vdwg.mxu0
    %v197 = vmax.f32 %v192, 0.0
    %v198 = vpack.c.bf16 %v197, %v197
    %v199 = vld [vmem:[#allocation8] sm:$0xf]
    %v200 = vld [vmem:[#allocation8 + $0x4] sm:$0xf]
    %v201 = vld [vmem:[#allocation8 + $0x8] sm:$0xf]
    %v202 = vld [vmem:[#allocation8 + $0xc] sm:$0xf]
    %v203 = vld [vmem:[#allocation8 + $0x10] sm:$0xf]
    %v204 = vld [vmem:[#allocation8 + $0x14] sm:$0xf]
    %v205 = vld [vmem:[#allocation8 + $0x18] sm:$0xf]
    %v206 = vld [vmem:[#allocation8 + $0x1c] sm:$0xf]
    %v207 = vld [vmem:[#allocation8 + $0x20] sm:$0xf]
    %v208 = vld [vmem:[#allocation8 + $0x24] sm:$0xf]
    %v209 = vld [vmem:[#allocation8 + $0x28] sm:$0xf]
    %v210 = vld [vmem:[#allocation8 + $0x2c] sm:$0xf]
    %v211 = vld [vmem:[#allocation8 + $0x30] sm:$0xf]
    %v212 = vld [vmem:[#allocation8 + $0x34] sm:$0xf]
    %v213 = vld [vmem:[#allocation8 + $0x38] sm:$0xf]
    %v214 = vld [vmem:[#allocation8 + $0x3c] sm:$0xf]
    %v215 = vld [vmem:[#allocation10] sm:$0x1]
    %v217 = vlaneseq
    %v218 = vshrl.u32 %v217, 7
    %v219 = vsub.s32 0, %v218
    %v220 = vrot.slane %v215, %v219
    %v238 = vunpack.c.l.b16 %v199
    %v239 = vunpack.c.l.b16 %v200
    %v240 = vunpack.c.l.b16 %v201
    %v241 = vunpack.c.l.b16 %v202
    %v242 = vunpack.c.l.b16 %v203
    %v243 = vunpack.c.l.b16 %v204
    %v244 = vunpack.c.l.b16 %v205
    %v245 = vunpack.c.l.b16 %v206
    %v246 = vunpack.c.l.b16 %v207
    %v247 = vunpack.c.l.b16 %v208
    %v248 = vunpack.c.l.b16 %v209
    %v249 = vunpack.c.l.b16 %v210
    %v250 = vunpack.c.l.b16 %v211
    %v251 = vunpack.c.l.b16 %v212
    %v252 = vunpack.c.l.b16 %v213
    %v253 = vunpack.c.l.b16 %v214
    %v254 = vpack.c.b16 %v239, %v238
    %v255 = vpack.c.b16 %v241, %v240
    %v256 = vpack.c.b16 %v243, %v242
    %v257 = vpack.c.b16 %v245, %v244
    %v258 = vpack.c.b16 %v247, %v246
    %v259 = vpack.c.b16 %v249, %v248
    %v260 = vpack.c.b16 %v251, %v250
    %v261 = vpack.c.b16 %v253, %v252
    %270 = vmatprep.subr.bf16.mxu0 0
    %271 = vmatpush1.bf16.msra.mxu0 %v254
    %272 = vmatprep.subr.bf16.mxu0 0
    %273 = vmatpush1.bf16.msra.mxu0 %v255
    %274 = vmatprep.subr.bf16.mxu0 0
    %275 = vmatpush1.bf16.msra.mxu0 %v256
    %276 = vmatprep.subr.bf16.mxu0 0
    %277 = vmatpush1.bf16.msra.mxu0 %v257
    %278 = vmatprep.subr.bf16.mxu0 0
    %279 = vmatpush1.bf16.msra.mxu0 %v258
    %280 = vmatprep.subr.bf16.mxu0 0
    %281 = vmatpush1.bf16.msra.mxu0 %v259
    %282 = vmatprep.subr.bf16.mxu0 0
    %283 = vmatpush1.bf16.msra.mxu0 %v260
    %284 = vmatprep.subr.bf16.mxu0 0
    %285 = vmatpush1.bf16.msra.mxu0 %v261
    %286 = vmatprep.subr.bf16.mxu0 0
    %287 = vmatpush1.bf16.msra.mxu0 0
    %288 = vmatprep.subr.bf16.mxu0 0
    %289 = vmatpush1.bf16.msra.mxu0 0
    %290 = vmatprep.subr.bf16.mxu0 0
    %291 = vmatpush1.bf16.msra.mxu0 0
    %292 = vmatprep.subr.bf16.mxu0 0
    %293 = vmatpush1.bf16.msra.mxu0 0
    %294 = vmatprep.subr.bf16.mxu0 0
    %295 = vmatpush1.bf16.msra.mxu0 0
    %296 = vmatprep.subr.bf16.mxu0 0
    %297 = vmatpush1.bf16.msra.mxu0 0
    %298 = vmatprep.subr.bf16.mxu0 0
    %299 = vmatpush1.bf16.msra.mxu0 0
    %300 = vmatprep.subr.bf16.mxu0 0
    %301 = vmatpush1.bf16.msra.mxu0 0
    %302 = vmatprep.mubr.bf16.mxu0 0
    %303 = vmatmul.mubr.bf16.gmra.mrb[0].mxu0 %v198
    %v304 = vpop.f32.mrb[0].mxu0
    %v305 = vadd.f32 %v220, %v304
    %v306 = vpop.f32.mrb[0].mxu0
    %v307 = vpop.f32.mrb[0].mxu0
    %v308 = vpop.f32.mrb[0].mxu0
    %309 = vdwg.mxu0
    %310 = vst [vmem:[#allocation11] sm:$0xff] %v305
    // Predicated region
    $region42: #{mlp_forward.1} parent=1 // pred_check
      _
    $region43: #{mlp_forward.1} parent=1 // pred_check_branch
      %312 = sbr.rel (0) target = $region45
    $region44: #{mlp_forward.1} parent=1 // pred_region
      %s314 = ssub.s32 128, 128
      %315 = vsyncadd [#allocation4], %s314
      %s317 = sshll.u32 [#allocation11], 4
      %s318 = int_to_ptr.vmem [resolvable:$true] %s317
      %320 = dma.vmem_to_hbm [thread:$0]  %s318, 128, %s5, [#allocation4]
    $region45: #{mlp_forward.1} parent=1 // pred_fallthru
      _
    // Predicated region
    $region46: #{mlp_forward.1} parent=1 // pred_check
      _
    $region47: #{mlp_forward.1} parent=1 // pred_check_branch
      %322 = sbr.rel (0) target = $region49
    $region48: #{mlp_forward.1} parent=1 // pred_region
      %323 = dma.done [#allocation4], 128
    $region49: #{mlp_forward.1} parent=1 // pred_fallthru
      _
    %324 = vsyncpa [#allocation3], 1
    %325 = vsyncpa [#allocation6], 1
    %326 = vsyncpa [#allocation9], 1
    %327 = vsyncpa [#allocation4], 1

// kernel: mlp_forward.1
$region0: #{mlp_forward.1}
  #allocation0 [shape = 'u32[]', space=smem, size = 0x4, offset = 0x4, fixed_abs, tag = 'smem constant byte address 0x4 - core index']
  #allocation1 [shape = 'u32[144,128]{1,0:T(1,128)}', space=vmem, size = 0x12000, scoped, tag = 'internal scratch']
  %s0 = inlined_call_operand.hbm [shape: f32[8,128], index: 0, kind: input, shape index: {}]
  %s1 = inlined_call_operand.hbm [shape: bf16[128,128], index: 1, kind: input, shape index: {}]
  %s2 = inlined_call_operand.hbm [shape: f32[1,128], index: 2, kind: input, shape index: {}]
  %s3 = inlined_call_operand.hbm [shape: bf16[128,128], index: 3, kind: input, shape index: {}]
  %s4 = inlined_call_operand.hbm [shape: f32[1,128], index: 4, kind: input, shape index: {}]
  %s5 = inlined_call_operand.hbm [shape: f32[8,128], index: 5, kind: output, shape index: {}]
  %s6 = sld [smem:[#allocation0]]
  $region50: #{mlp_forward.1} parent=0
    _
  %s8 = ssub.s32 1, %s6
  %s9 = scalar_select 0, %s8, %s6
  $region1: #{mlp_forward.1} parent=0
    #allocation2 [shape = 'u8[4096]{0}', space=vmem, size = 0x1000, scoped, tag = 'input window, operand 0, single buffered']
    #allocation3 [shape = 's32[1]{0}', space=sflag, size = 0x4, scoped, tag = 'scoped memory for mlp_forward.1']
    #allocation4 [shape = 's32[1]{0}', space=sflag, size = 0x4, scoped, tag = 'scoped memory for mlp_forward.1']
    #allocation5 [shape = 'u8[32768]{0}', space=vmem, size = 0x8000, scoped, tag = 'input window, operand 1, single buffered']
    #allocation6 [shape = 's32[1]{0}', space=sflag, size = 0x4, scoped, tag = 'scoped memory for mlp_forward.1']
    #allocation7 [shape = 'u8[512]{0}', space=vmem, size = 0x400, scoped, tag = 'input window, operand 2, single buffered']
    #allocation8 [shape = 'u8[32768]{0}', space=vmem, size = 0x8000, scoped, tag = 'input window, operand 3, single buffered']
    #allocation9 [shape = 's32[1]{0}', space=sflag, size = 0x4, scoped, tag = 'scoped memory for mlp_forward.1']
    #allocation10 [shape = 'u8[512]{0}', space=vmem, size = 0x400, scoped, tag = 'input window, operand 4, single buffered']
    #allocation11 [shape = 'u8[4096]{0}', space=vmem, size = 0x1000, scoped, tag = 'output window, operand 0, single buffered']
    %10 = vsyncpa [#allocation3], 0
    %11 = vsyncpa [#allocation6], 0
    %12 = vsyncpa [#allocation9], 0
    %13 = vsyncpa [#allocation4], 0
    // Predicated region
    $region2: #{mlp_forward.1} parent=1 // pred_check
      _
    $region3: #{mlp_forward.1} parent=1 // pred_check_branch
      %15 = sbr.rel (0) target = $region5
    $region4: #{mlp_forward.1} parent=1 // pred_region
      %s17 = ssub.s32 128, 128
      %18 = vsyncadd [#allocation3], %s17
      %s20 = sshll.u32 [#allocation2], 4
      %s21 = int_to_ptr.vmem [resolvable:$true] %s20
      %23 = dma.hbm_to_vmem [thread:$0]  %s0, 128, %s21, [#allocation3]
    $region5: #{mlp_forward.1} parent=1 // pred_fallthru
      _
    // Predicated region
    $region6: #{mlp_forward.1} parent=1 // pred_check
      _
    $region7: #{mlp_forward.1} parent=1 // pred_check_branch
      %25 = sbr.rel (0) target = $region9
    $region8: #{mlp_forward.1} parent=1 // pred_region
      %s27 = ssub.s32 1024, 1024
      %28 = vsyncadd [#allocation6], %s27
      %s29 = sshll.u32 [#allocation5], 4
      %s30 = int_to_ptr.vmem [resolvable:$true] %s29
      %35 = dma.hbm_to_vmem [thread:$0]  %s1, 1024, %s30, [#allocation6], 64, 64, 4
    $region9: #{mlp_forward.1} parent=1 // pred_fallthru
      _
    // Predicated region
    $region10: #{mlp_forward.1} parent=1 // pred_check
      _
    $region11: #{mlp_forward.1} parent=1 // pred_check_branch
      %37 = sbr.rel (0) target = $region13
    $region12: #{mlp_forward.1} parent=1 // pred_region
      %s39 = ssub.s32 16, 16
      %40 = vsyncadd [#allocation6], %s39
      %s42 = sshll.u32 [#allocation7], 4
      %s43 = int_to_ptr.vmem [resolvable:$true] %s42
      %45 = dma.hbm_to_vmem [thread:$0]  %s2, 16, %s43, [#allocation6]
    $region13: #{mlp_forward.1} parent=1 // pred_fallthru
      _
    // Predicated region
    $region14: #{mlp_forward.1} parent=1 // pred_check
      _
    $region15: #{mlp_forward.1} parent=1 // pred_check_branch
      %47 = sbr.rel (0) target = $region17
    $region16: #{mlp_forward.1} parent=1 // pred_region
      %s49 = ssub.s32 1024, 1024
      %50 = vsyncadd [#allocation9], %s49
      %s51 = sshll.u32 [#allocation8], 4
      %s52 = int_to_ptr.vmem [resolvable:$true] %s51
      %57 = dma.hbm_to_vmem [thread:$0]  %s3, 1024, %s52, [#allocation9], 64, 64, 4
    $region17: #{mlp_forward.1} parent=1 // pred_fallthru
      _
    // Predicated region
    $region18: #{mlp_forward.1} parent=1 // pred_check
      _
    $region19: #{mlp_forward.1} parent=1 // pred_check_branch
      %59 = sbr.rel (0) target = $region21
    $region20: #{mlp_forward.1} parent=1 // pred_region
      %s61 = ssub.s32 16, 16
      %62 = vsyncadd [#allocation9], %s61
      %s64 = sshll.u32 [#allocation10], 4
      %s65 = int_to_ptr.vmem [resolvable:$true] %s64
      %67 = dma.hbm_to_vmem [thread:$0]  %s4, 16, %s65, [#allocation9]
    $region21: #{mlp_forward.1} parent=1 // pred_fallthru
      _
    // Predicated region
    $region22: #{mlp_forward.1} parent=1 // pred_check
      _
    $region23: #{mlp_forward.1} parent=1 // pred_check_branch
      %69 = sbr.rel (0) target = $region25
    $region24: #{mlp_forward.1} parent=1 // pred_region
      %70 = dma.done [#allocation3], 128
    $region25: #{mlp_forward.1} parent=1 // pred_fallthru
      _
    // Predicated region
    $region26: #{mlp_forward.1} parent=1 // pred_check
      _
    $region27: #{mlp_forward.1} parent=1 // pred_check_branch
      %72 = sbr.rel (0) target = $region29
    $region28: #{mlp_forward.1} parent=1 // pred_region
      %73 = dma.done [#allocation6], 1024
    $region29: #{mlp_forward.1} parent=1 // pred_fallthru
      _
    // Predicated region
    $region30: #{mlp_forward.1} parent=1 // pred_check
      _
    $region31: #{mlp_forward.1} parent=1 // pred_check_branch
      %75 = sbr.rel (0) target = $region33
    $region32: #{mlp_forward.1} parent=1 // pred_region
      %76 = dma.done [#allocation6], 16
    $region33: #{mlp_forward.1} parent=1 // pred_fallthru
      _
    // Predicated region
    $region34: #{mlp_forward.1} parent=1 // pred_check
      _
    $region35: #{mlp_forward.1} parent=1 // pred_check_branch
      %78 = sbr.rel (0) target = $region37
    $region36: #{mlp_forward.1} parent=1 // pred_region
      %79 = dma.done [#allocation9], 1024
    $region37: #{mlp_forward.1} parent=1 // pred_fallthru
      _
    // Predicated region
    $region38: #{mlp_forward.1} parent=1 // pred_check
      _
    $region39: #{mlp_forward.1} parent=1 // pred_check_branch
      %81 = sbr.rel (0) target = $region41
    $region40: #{mlp_forward.1} parent=1 // pred_region
      %82 = dma.done [#allocation9], 16
    $region41: #{mlp_forward.1} parent=1 // pred_fallthru
      _
    %v84 = vld [vmem:[#allocation2] sm:$0xff]
    %v85 = vpack.c.bf16 %v84, %v84
    %v86 = vld [vmem:[#allocation5] sm:$0xf]
    %v87 = vld [vmem:[#allocation5 + $0x4] sm:$0xf]
    %v88 = vld [vmem:[#allocation5 + $0x8] sm:$0xf]
    %v89 = vld [vmem:[#allocation5 + $0xc] sm:$0xf]
    %v90 = vld [vmem:[#allocation5 + $0x10] sm:$0xf]
    %v91 = vld [vmem:[#allocation5 + $0x14] sm:$0xf]
    %v92 = vld [vmem:[#allocation5 + $0x18] sm:$0xf]
    %v93 = vld [vmem:[#allocation5 + $0x1c] sm:$0xf]
    %v94 = vld [vmem:[#allocation5 + $0x20] sm:$0xf]
    %v95 = vld [vmem:[#allocation5 + $0x24] sm:$0xf]
    %v96 = vld [vmem:[#allocation5 + $0x28] sm:$0xf]
    %v97 = vld [vmem:[#allocation5 + $0x2c] sm:$0xf]
    %v98 = vld [vmem:[#allocation5 + $0x30] sm:$0xf]
    %v99 = vld [vmem:[#allocation5 + $0x34] sm:$0xf]
    %v100 = vld [vmem:[#allocation5 + $0x38] sm:$0xf]
    %v101 = vld [vmem:[#allocation5 + $0x3c] sm:$0xf]
    %v102 = vld [vmem:[#allocation7] sm:$0x1]
    %v104 = vlaneseq
    %v105 = vshrl.u32 %v104, 7
    %v106 = vsub.s32 0, %v105
    %v107 = vrot.slane %v102, %v106
    %v125 = vunpack.c.l.b16 %v86
    %v126 = vunpack.c.l.b16 %v87
    %v127 = vunpack.c.l.b16 %v88
    %v128 = vunpack.c.l.b16 %v89
    %v129 = vunpack.c.l.b16 %v90
    %v130 = vunpack.c.l.b16 %v91
    %v131 = vunpack.c.l.b16 %v92
    %v132 = vunpack.c.l.b16 %v93
    %v133 = vunpack.c.l.b16 %v94
    %v134 = vunpack.c.l.b16 %v95
    %v135 = vunpack.c.l.b16 %v96
    %v136 = vunpack.c.l.b16 %v97
    %v137 = vunpack.c.l.b16 %v98
    %v138 = vunpack.c.l.b16 %v99
    %v139 = vunpack.c.l.b16 %v100
    %v140 = vunpack.c.l.b16 %v101
    %v141 = vpack.c.b16 %v126, %v125
    %v142 = vpack.c.b16 %v128, %v127
    %v143 = vpack.c.b16 %v130, %v129
    %v144 = vpack.c.b16 %v132, %v131
    %v145 = vpack.c.b16 %v134, %v133
    %v146 = vpack.c.b16 %v136, %v135
    %v147 = vpack.c.b16 %v138, %v137
    %v148 = vpack.c.b16 %v140, %v139
    %157 = vmatprep.subr.bf16.mxu0 0
    %158 = vmatpush1.bf16.msra.mxu0 %v141
    %159 = vmatprep.subr.bf16.mxu0 0
    %160 = vmatpush1.bf16.msra.mxu0 %v142
    %161 = vmatprep.subr.bf16.mxu0 0
    %162 = vmatpush1.bf16.msra.mxu0 %v143
    %163 = vmatprep.subr.bf16.mxu0 0
    %164 = vmatpush1.bf16.msra.mxu0 %v144
    %165 = vmatprep.subr.bf16.mxu0 0
    %166 = vmatpush1.bf16.msra.mxu0 %v145
    %167 = vmatprep.subr.bf16.mxu0 0
    %168 = vmatpush1.bf16.msra.mxu0 %v146
    %169 = vmatprep.subr.bf16.mxu0 0
    %170 = vmatpush1.bf16.msra.mxu0 %v147
    %171 = vmatprep.subr.bf16.mxu0 0
    %172 = vmatpush1.bf16.msra.mxu0 %v148
    %173 = vmatprep.subr.bf16.mxu0 0
    %174 = vmatpush1.bf16.msra.mxu0 0
    %175 = vmatprep.subr.bf16.mxu0 0
    %176 = vmatpush1.bf16.msra.mxu0 0
    %177 = vmatprep.subr.bf16.mxu0 0
    %178 = vmatpush1.bf16.msra.mxu0 0
    %179 = vmatprep.subr.bf16.mxu0 0
    %180 = vmatpush1.bf16.msra.mxu0 0
    %181 = vmatprep.subr.bf16.mxu0 0
    %182 = vmatpush1.bf16.msra.mxu0 0
    %183 = vmatprep.subr.bf16.mxu0 0
    %184 = vmatpush1.bf16.msra.mxu0 0
    %185 = vmatprep.subr.bf16.mxu0 0
    %186 = vmatpush1.bf16.msra.mxu0 0
    %187 = vmatprep.subr.bf16.mxu0 0
    %188 = vmatpush1.bf16.msra.mxu0 0
    %189 = vmatprep.mubr.bf16.mxu0 0
    %190 = vmatmul.mubr.bf16.gmra.mrb[0].mxu0 %v85
    %v191 = vpop.f32.mrb[0].mxu0
    %v192 = vadd.f32 %v107, %v191
    %v193 = vpop.f32.mrb[0].mxu0
    %v194 = vpop.f32.mrb[0].mxu0
    %v195 = vpop.f32.mrb[0].mxu0
    %196 = vdwg.mxu0
    %v197 = vmax.f32 %v192, 0.0
    %v198 = vpack.c.bf16 %v197, %v197
    %v199 = vld [vmem:[#allocation8] sm:$0xf]
    %v200 = vld [vmem:[#allocation8 + $0x4] sm:$0xf]
    %v201 = vld [vmem:[#allocation8 + $0x8] sm:$0xf]
    %v202 = vld [vmem:[#allocation8 + $0xc] sm:$0xf]
    %v203 = vld [vmem:[#allocation8 + $0x10] sm:$0xf]
    %v204 = vld [vmem:[#allocation8 + $0x14] sm:$0xf]
    %v205 = vld [vmem:[#allocation8 + $0x18] sm:$0xf]
    %v206 = vld [vmem:[#allocation8 + $0x1c] sm:$0xf]
    %v207 = vld [vmem:[#allocation8 + $0x20] sm:$0xf]
    %v208 = vld [vmem:[#allocation8 + $0x24] sm:$0xf]
    %v209 = vld [vmem:[#allocation8 + $0x28] sm:$0xf]
    %v210 = vld [vmem:[#allocation8 + $0x2c] sm:$0xf]
    %v211 = vld [vmem:[#allocation8 + $0x30] sm:$0xf]
    %v212 = vld [vmem:[#allocation8 + $0x34] sm:$0xf]
    %v213 = vld [vmem:[#allocation8 + $0x38] sm:$0xf]
    %v214 = vld [vmem:[#allocation8 + $0x3c] sm:$0xf]
    %v215 = vld [vmem:[#allocation10] sm:$0x1]
    %v217 = vlaneseq
    %v218 = vshrl.u32 %v217, 7
    %v219 = vsub.s32 0, %v218
    %v220 = vrot.slane %v215, %v219
    %v238 = vunpack.c.l.b16 %v199
    %v239 = vunpack.c.l.b16 %v200
    %v240 = vunpack.c.l.b16 %v201
    %v241 = vunpack.c.l.b16 %v202
    %v242 = vunpack.c.l.b16 %v203
    %v243 = vunpack.c.l.b16 %v204
    %v244 = vunpack.c.l.b16 %v205
    %v245 = vunpack.c.l.b16 %v206
    %v246 = vunpack.c.l.b16 %v207
    %v247 = vunpack.c.l.b16 %v208
    %v248 = vunpack.c.l.b16 %v209
    %v249 = vunpack.c.l.b16 %v210
    %v250 = vunpack.c.l.b16 %v211
    %v251 = vunpack.c.l.b16 %v212
    %v252 = vunpack.c.l.b16 %v213
    %v253 = vunpack.c.l.b16 %v214
    %v254 = vpack.c.b16 %v239, %v238
    %v255 = vpack.c.b16 %v241, %v240
    %v256 = vpack.c.b16 %v243, %v242
    %v257 = vpack.c.b16 %v245, %v244
    %v258 = vpack.c.b16 %v247, %v246
    %v259 = vpack.c.b16 %v249, %v248
    %v260 = vpack.c.b16 %v251, %v250
    %v261 = vpack.c.b16 %v253, %v252
    %270 = vmatprep.subr.bf16.mxu0 0
    %271 = vmatpush1.bf16.msra.mxu0 %v254
    %272 = vmatprep.subr.bf16.mxu0 0
    %273 = vmatpush1.bf16.msra.mxu0 %v255
    %274 = vmatprep.subr.bf16.mxu0 0
    %275 = vmatpush1.bf16.msra.mxu0 %v256
    %276 = vmatprep.subr.bf16.mxu0 0
    %277 = vmatpush1.bf16.msra.mxu0 %v257
    %278 = vmatprep.subr.bf16.mxu0 0
    %279 = vmatpush1.bf16.msra.mxu0 %v258
    %280 = vmatprep.subr.bf16.mxu0 0
    %281 = vmatpush1.bf16.msra.mxu0 %v259
    %282 = vmatprep.subr.bf16.mxu0 0
    %283 = vmatpush1.bf16.msra.mxu0 %v260
    %284 = vmatprep.subr.bf16.mxu0 0
    %285 = vmatpush1.bf16.msra.mxu0 %v261
    %286 = vmatprep.subr.bf16.mxu0 0
    %287 = vmatpush1.bf16.msra.mxu0 0
    %288 = vmatprep.subr.bf16.mxu0 0
    %289 = vmatpush1.bf16.msra.mxu0 0
    %290 = vmatprep.subr.bf16.mxu0 0
    %291 = vmatpush1.bf16.msra.mxu0 0
    %292 = vmatprep.subr.bf16.mxu0 0
    %293 = vmatpush1.bf16.msra.mxu0 0
    %294 = vmatprep.subr.bf16.mxu0 0
    %295 = vmatpush1.bf16.msra.mxu0 0
    %296 = vmatprep.subr.bf16.mxu0 0
    %297 = vmatpush1.bf16.msra.mxu0 0
    %298 = vmatprep.subr.bf16.mxu0 0
    %299 = vmatpush1.bf16.msra.mxu0 0
    %300 = vmatprep.subr.bf16.mxu0 0
    %301 = vmatpush1.bf16.msra.mxu0 0
    %302 = vmatprep.mubr.bf16.mxu0 0
    %303 = vmatmul.mubr.bf16.gmra.mrb[0].mxu0 %v198
    %v304 = vpop.f32.mrb[0].mxu0
    %v305 = vadd.f32 %v220, %v304
    %v306 = vpop.f32.mrb[0].mxu0
    %v307 = vpop.f32.mrb[0].mxu0
    %v308 = vpop.f32.mrb[0].mxu0
    %309 = vdwg.mxu0
    %310 = vst [vmem:[#allocation11] sm:$0xff] %v305
    // Predicated region
    $region42: #{mlp_forward.1} parent=1 // pred_check
      _
    $region43: #{mlp_forward.1} parent=1 // pred_check_branch
      %312 = sbr.rel (0) target = $region45
    $region44: #{mlp_forward.1} parent=1 // pred_region
      %s314 = ssub.s32 128, 128
      %315 = vsyncadd [#allocation4], %s314
      %s317 = sshll.u32 [#allocation11], 4
      %s318 = int_to_ptr.vmem [resolvable:$true] %s317
      %320 = dma.vmem_to_hbm [thread:$0]  %s318, 128, %s5, [#allocation4]
    $region45: #{mlp_forward.1} parent=1 // pred_fallthru
      _
    // Predicated region
    $region46: #{mlp_forward.1} parent=1 // pred_check
      _
    $region47: #{mlp_forward.1} parent=1 // pred_check_branch
      %322 = sbr.rel (0) target = $region49
    $region48: #{mlp_forward.1} parent=1 // pred_region
      %323 = dma.done [#allocation4], 128
    $region49: #{mlp_forward.1} parent=1 // pred_fallthru
      _
    %324 = vsyncpa [#allocation3], 1
    %325 = vsyncpa [#allocation6], 1
    %326 = vsyncpa [#allocation9], 1
    %327 = vsyncpa [#allocation4], 1

</llo_original>
